<compile_context>
chip_gen: v7x
topology: tpu7x:2x2x1
jax: 0.10.0
libtpu: 0.0.40
codegen_flags: <defaults>
</compile_context>

<pallas_src>
import jax
import jax.numpy as jnp
from jax.experimental import pallas as pl
from jax.experimental.pallas import tpu as pltpu


# ----------------------------------------------------------------------------
# Helpers
# ----------------------------------------------------------------------------
def _round_up(n, m):
    return ((n + m - 1) // m) * m


def _pick_tile(total, cap):
    """Largest multiple-of-128 divisor of `total` that is <= cap (total is a
    multiple of 128, so 128 always works)."""
    best = 128
    d = 128
    while d <= min(total, cap):
        if total % d == 0:
            best = d
        d += 128
    return best


def _pick_tm(B):
    """Batch tile: multiple of 16 (bf16 sublane packing), capped at 256, and
    preferring >= 2 tiles once B >= 256 so v7x's two TensorCores split the
    'parallel' batch axis."""
    if B <= 240:
        return min(128, _round_up(B, 16))
    tm = 256
    if _round_up(B, tm) // tm < 2:     # a single 256-row tile -> split instead
        tm = 128
    return tm


def _vmem_limit(budget_bytes):
    """Explicit scoped-VMEM limit: at least the budget (+50% headroom), never
    below 16 MiB (v5e default) and never above v7x's 64 MiB physical VMEM."""
    return int(min(64 * 1024 * 1024, max(16 * 1024 * 1024, budget_bytes * 3 // 2)))


def _maybe_pad_cast(x, b_pad, k_pad, d_in, compute_dtype):
    """Fast path: if x is already lane/tile aligned, pass it through untouched
    (the kernel casts to bf16 in-register).  Otherwise pad + cast once."""
    B = x.shape[0]
    if B == b_pad and d_in == k_pad:
        return x
    return jnp.zeros((b_pad, k_pad), compute_dtype).at[:B, :d_in].set(
        x.astype(compute_dtype))


# ----------------------------------------------------------------------------
# Kernels
# ----------------------------------------------------------------------------
def _single_gemm_kernel(x_ref, w_ref, b_ref, out_ref):
    """Composed path: out = x @ Wc + bc (Wc already folds Linear1, BN, Linear2).

    Grid = (batch_tiles,).  W/bias have constant index_maps -> resident blocks.
    """
    xv = x_ref[...].astype(w_ref.dtype)          # free in-register cast
    acc = jnp.dot(xv, w_ref[...], preferred_element_type=jnp.float32)
    out_ref[...] = (acc + b_ref[...]).astype(out_ref.dtype)


def _two_gemm_kernel(x_ref, w1_ref, b1_ref, w2_ref, b2_ref, out_ref, h_ref):
    """Two-GEMM path (large class_num): grid = (batch_tiles, n_tiles).

    The hidden activation (first GEMM + BN-folded bias) is computed once per
    batch tile (j == 0) into a bf16 VMEM scratch; each N tile then runs the
    classifier GEMM against its W2 slab and writes a lane-dense output tile.
    The N axis is 'arbitrary' so the scratch dependency stays on one core.
    """
    j = pl.program_id(1)

    @pl.when(j == 0)
    def _():
        xv = x_ref[...].astype(w1_ref.dtype)
        h = jnp.dot(xv, w1_ref[...], preferred_element_type=jnp.float32)
        h_ref[...] = (h + b1_ref[...]).astype(h_ref.dtype)

    out = jnp.dot(h_ref[...], w2_ref[...], preferred_element_type=jnp.float32)
    out_ref[...] = (out + b2_ref[...]).astype(out_ref.dtype)


# ----------------------------------------------------------------------------
# One-time parameter preparation (outside the per-call forward path)
# ----------------------------------------------------------------------------
def prepare_params(params, eps=1e-5, compute_dtype=jnp.bfloat16, compose=None):
    """Fold BatchNorm1d (inference) into Linear1, transpose to matmul layout,
    zero-pad feature dims to multiples of 128, cast weights to bf16 (biases
    stay f32).  Optionally precompose the two affine layers into one GEMM."""
    w1 = params["w1"]            # (linear, input_dim)
    b1 = params["b1"]            # (linear,)
    w2 = params["w2"]            # (class_num, linear)
    b2 = params["b2"]            # (class_num,)

    inv_std = 1.0 / jnp.sqrt(params["bn_var"] + eps)
    scale = params["bn_gamma"] * inv_std                    # (linear,)
    shift = params["bn_beta"] - params["bn_mean"] * scale   # (linear,)

    # BN(x W1^T + b1) = x (W1^T * scale) + (b1 * scale + shift)   (exact fold)
    w1_t = w1.T * scale[None, :]          # (input_dim, linear)
    b1_f = b1 * scale + shift             # (linear,)
    w2_t = w2.T                           # (linear, class_num)

    d_in, linear = w1_t.shape
    class_num = w2_t.shape[1]
    k_pad = _round_up(d_in, 128)
    c_pad = _round_up(class_num, 128)

    if compose is None:
        # Composed weight is smaller than W1+W2 iff K*C < L*(K+C).
        compose = d_in * class_num < linear * (d_in + class_num)

    if compose:
        # Fully affine in eval mode -> fold both layers into one GEMM (in f32,
        # then cast once to bf16).
        wc = w1_t @ w2_t                  # (input_dim, class_num)  f32
        bc = b1_f @ w2_t + b2             # (class_num,)            f32
        w_p = jnp.zeros((k_pad, c_pad), compute_dtype).at[:d_in, :class_num].set(
            wc.astype(compute_dtype))
        b_p = jnp.zeros((1, c_pad), jnp.float32).at[0, :class_num].set(bc)
        return dict(compose=True, w=w_p, b=b_p,
                    d_in=d_in, class_num=class_num, compute_dtype=compute_dtype)

    l_pad = _round_up(linear, 128)
    w1_p = jnp.zeros((k_pad, l_pad), compute_dtype).at[:d_in, :linear].set(
        w1_t.astype(compute_dtype))
    w2_p = jnp.zeros((l_pad, c_pad), compute_dtype).at[:linear, :class_num].set(
        w2_t.astype(compute_dtype))
    b1_p = jnp.zeros((1, l_pad), jnp.float32).at[0, :linear].set(b1_f)
    b2_p = jnp.zeros((1, c_pad), jnp.float32).at[0, :class_num].set(b2)
    return dict(compose=False, w1=w1_p, b1=b1_p, w2=w2_p, b2=b2_p,
                d_in=d_in, class_num=class_num, compute_dtype=compute_dtype)


# ----------------------------------------------------------------------------
# Forward
# ----------------------------------------------------------------------------
def class_block_forward(x, prep):
    """Fused ClassBlock forward (eval mode).  x: (B, input_dim)."""
    compute_dtype = prep["compute_dtype"]
    d_in, class_num = prep["d_in"], prep["class_num"]
    B = x.shape[0]
    assert x.shape[1] == d_in

    tm = _pick_tm(B)
    b_pad = _round_up(B, tm)

    if prep["compose"]:
        w, b = prep["w"], prep["b"]
        k_pad, c_pad = w.shape
        x_in = _maybe_pad_cast(x, b_pad, k_pad, d_in, compute_dtype)
        xb = x_in.dtype.itemsize

        # TODO(synk): for extreme input_dim (> ~8k) add a K-tiled fallback; for
        # ClassBlock-sized heads the whole reduction fits VMEM in one step.
        budget = (2 * tm * k_pad * xb                       # x tile (dbl-buffered)
                  + 2 * (k_pad * c_pad * w.dtype.itemsize   # resident W
                         + c_pad * 4)                       # bias
                  + 2 * tm * c_pad * 4)                     # out tile
        flops = 2 * b_pad * k_pad * c_pad
        bytes_accessed = (x_in.size * xb + w.size * w.dtype.itemsize
                          + b.size * 4 + b_pad * c_pad * 4)

        out_p = pl.pallas_call(
            _single_gemm_kernel,
            out_shape=jax.ShapeDtypeStruct((b_pad, c_pad), jnp.float32),
            grid_spec=pltpu.PrefetchScalarGridSpec(
                num_scalar_prefetch=0,
                grid=(b_pad // tm,),
                in_specs=[
                    pl.BlockSpec((tm, k_pad), lambda i: (i, 0)),     # x tile
                    pl.BlockSpec((k_pad, c_pad), lambda i: (0, 0)),  # Wc (resident)
                    pl.BlockSpec((1, c_pad), lambda i: (0, 0)),      # bc
                ],
                out_specs=pl.BlockSpec((tm, c_pad), lambda i: (i, 0)),
            ),
            compiler_params=pltpu.CompilerParams(
                dimension_semantics=("parallel",),
                vmem_limit_bytes=_vmem_limit(budget)),
            cost_estimate=pl.CostEstimate(flops=flops, transcendentals=0,
                                          bytes_accessed=bytes_accessed),
        )(x_in, w, b)
        return out_p[:B, :class_num]

    # ---- two-GEMM path (large class_num: BN-folded Linear1 -> Linear2) ----
    w1, b1, w2, b2 = prep["w1"], prep["b1"], prep["w2"], prep["b2"]
    k_pad, l_pad = w1.shape
    c_pad = w2.shape[1]
    x_in = _maybe_pad_cast(x, b_pad, k_pad, d_in, compute_dtype)
    xb = x_in.dtype.itemsize

    tn = _pick_tile(c_pad, 2048)          # class_num tile (lane-dense output)
    n_btiles = b_pad // tm
    grid = (n_btiles, c_pad // tn)

    wb = w1.dtype.itemsize
    budget = (2 * tm * k_pad * xb                    # x tile
              + 2 * (k_pad * l_pad * wb + l_pad * 4) # W1 + b1 (resident)
              + 2 * (l_pad * tn * wb + tn * 4)       # W2 / b2 tiles
              + 2 * tm * tn * 4                      # out tile
              + tm * l_pad * 2)                      # bf16 hidden scratch
    flops = 2 * b_pad * k_pad * l_pad + 2 * b_pad * l_pad * c_pad
    bytes_accessed = (x_in.size * xb
                      + w1.size * wb + b1.size * 4
                      + n_btiles * (w2.size * wb + b2.size * 4)  # W2 re-read per batch tile
                      + b_pad * c_pad * 4)

    out_p = pl.pallas_call(
        _two_gemm_kernel,
        out_shape=jax.ShapeDtypeStruct((b_pad, c_pad), jnp.float32),
        grid_spec=pltpu.PrefetchScalarGridSpec(
            num_scalar_prefetch=0,
            grid=grid,
            in_specs=[
                pl.BlockSpec((tm, k_pad), lambda i, j: (i, 0)),     # x tile
                pl.BlockSpec((k_pad, l_pad), lambda i, j: (0, 0)),  # W1 (resident)
                pl.BlockSpec((1, l_pad), lambda i, j: (0, 0)),      # folded BN bias
                pl.BlockSpec((l_pad, tn), lambda i, j: (0, j)),     # W2 N-slab
                pl.BlockSpec((1, tn), lambda i, j: (0, j)),         # b2 N-slab
            ],
            out_specs=pl.BlockSpec((tm, tn), lambda i, j: (i, j)),
            scratch_shapes=[pltpu.VMEM((tm, l_pad), compute_dtype)],
        ),
        compiler_params=pltpu.CompilerParams(
            dimension_semantics=("parallel", "arbitrary"),
            vmem_limit_bytes=_vmem_limit(budget)),
        cost_estimate=pl.CostEstimate(flops=flops, transcendentals=0,
                                      bytes_accessed=bytes_accessed),
    )(x_in, w1, b1, w2, b2)
    return out_p[:B, :class_num]


# ----------------------------------------------------------------------------
# Synthetic params / reference / test
# ----------------------------------------------------------------------------
def init_params(key, input_dim, linear, class_num):
    """Deterministic synthetic parameter init (shapes match the PyTorch module)."""
    k1, k2, k3, k4, k5, k6 = jax.random.split(key, 6)
    w1 = jax.random.normal(k1, (linear, input_dim), jnp.float32) * (2.0 / input_dim) ** 0.5
    b1 = jax.random.normal(k2, (linear,), jnp.float32) * 0.01
    w2 = jax.random.normal(k3, (class_num, linear), jnp.float32) * 0.001
    b2 = jnp.zeros((class_num,), jnp.float32)
    bn_gamma = 1.0 + 0.01 * jax.random.normal(k4, (linear,), jnp.float32)
    bn_beta = jnp.zeros((linear,), jnp.float32)
    bn_mean = 0.1 * jax.random.normal(k5, (linear,), jnp.float32)
    bn_var = jnp.abs(jax.random.normal(k6, (linear,), jnp.float32)) * 0.5 + 0.5
    return dict(w1=w1, b1=b1, w2=w2, b2=b2,
                bn_gamma=bn_gamma, bn_beta=bn_beta,
                bn_mean=bn_mean, bn_var=bn_var)


def _reference(x, p):
    eps = 1e-5
    h = x @ p["w1"].T + p["b1"]
    h = (h - p["bn_mean"]) / jnp.sqrt(p["bn_var"] + eps) * p["bn_gamma"] + p["bn_beta"]
    return h @ p["w2"].T + p["b2"]         # Dropout in eval mode == identity


if __name__ == "__main__":
    key = jax.random.PRNGKey(0)
    kx1, kp1, kx2, kp2 = jax.random.split(key, 4)

    # --- Test 1: composed single-GEMM path (small, padded shapes) ------------
    B, input_dim, linear, class_num = 8, 32, 32, 16
    x1 = jax.random.normal(kx1, (B, input_dim), jnp.float32)
    params1 = init_params(kp1, input_dim, linear, class_num)
    prep1 = prepare_params(params1)                 # heuristic -> compose=True
    out1 = jax.block_until_ready(class_block_forward(x1, prep1))
    ref1 = _reference(x1, params1)
    assert out1.shape == (B, class_num)
    assert jnp.allclose(out1, ref1, atol=2e-3, rtol=5e-2), "composed path mismatch"

    # --- Test 2: two-GEMM path (lane-aligned, no-pad fast path, N-tiled) -----
    B2, input_dim2, linear2, class_num2 = 16, 128, 64, 256
    x2 = jax.random.normal(kx2, (B2, input_dim2), jnp.float32)
    params2 = init_params(kp2, input_dim2, linear2, class_num2)
    prep2 = prepare_params(params2, compose=False)  # force the two-GEMM kernel
    out2 = jax.block_until_ready(class_block_forward(x2, prep2))
    ref2 = _reference(x2, params2)
    assert out2.shape == (B2, class_num2)
    assert jnp.allclose(out2, ref2, atol=2e-3, rtol=5e-2), "two-GEMM path mismatch"

    print("KERNEL_OK")
</pallas_src>

<mosaic_0001>
module attributes {stable_mosaic.version = 11 : i64} {
  func.func @_single_gemm_kernel(%arg0: i32, %arg1: memref<16x128xbf16, #tpu.memory_space<vmem>>, %arg2: memref<128x128xbf16, #tpu.memory_space<vmem>>, %arg3: memref<1x128xf32, #tpu.memory_space<vmem>>, %arg4: memref<16x128xf32, #tpu.memory_space<vmem>>) attributes {dimension_semantics = [#tpu.dimension_semantics<parallel>], iteration_bounds = array<i64: 1>, scalar_prefetch = 0 : i64, scratch_operands = 0 : i64, tpu.core_type = #tpu.core_type<tc>, window_params = [{transform_indices = @transform_0, window_bounds = array<i64: 16, 128>}, {pipeline_mode = #tpu.pipeline_mode<synchronous>, transform_indices = @transform_1, window_bounds = array<i64: 128, 128>}, {pipeline_mode = #tpu.pipeline_mode<synchronous>, transform_indices = @transform_2, window_bounds = array<i64: 1, 128>}, {transform_indices = @transform_3, window_bounds = array<i64: 16, 128>}]} {
    %c0 = arith.constant 0 : index
    %c0_0 = arith.constant 0 : index
    %0 = vector.load %arg1[%c0, %c0_0] : memref<16x128xbf16, #tpu.memory_space<vmem>>, vector<16x128xbf16>
    %c0_1 = arith.constant 0 : index
    %c0_2 = arith.constant 0 : index
    %1 = vector.load %arg2[%c0_1, %c0_2] : memref<128x128xbf16, #tpu.memory_space<vmem>>, vector<128x128xbf16>
    %cst = arith.constant dense<0.000000e+00> : vector<16x128xf32>
    %2 = tpu.matmul %0, %1, %cst {dimension_numbers = #tpu.dot_dimension_numbers<[1], [0], [0], [1], [0, 0, 1, 1], [], []>} : vector<16x128xbf16>, vector<128x128xbf16>, vector<16x128xf32> -> vector<16x128xf32>
    %c0_3 = arith.constant 0 : index
    %c0_4 = arith.constant 0 : index
    %3 = vector.load %arg3[%c0_3, %c0_4] : memref<1x128xf32, #tpu.memory_space<vmem>>, vector<1x128xf32>
    %4 = vector.broadcast %3 : vector<1x128xf32> to vector<16x128xf32>
    %5 = arith.addf %2, %4 : vector<16x128xf32>
    %c0_5 = arith.constant 0 : index
    %c0_6 = arith.constant 0 : index
    %6 = vector.load %arg4[%c0_5, %c0_6] : memref<16x128xf32, #tpu.memory_space<vmem>>, vector<16x128xf32>
    tpu.vector_store %arg4[%c0_5, %c0_6], %5 {strides = array<i32>} : memref<16x128xf32, #tpu.memory_space<vmem>>, vector<16x128xf32>,
    return
  }
  func.func @transform_0(%arg0: i32) -> (i32, i32) {
    %c0_i32 = arith.constant 0 : i32
    %c0_i32_0 = arith.constant 0 : i32
    return %arg0, %c0_i32 : i32, i32
  }
  func.func @transform_1(%arg0: i32) -> (i32, i32) {
    %c0_i32 = arith.constant 0 : i32
    %c0_i32_0 = arith.constant 0 : i32
    %c0_i32_1 = arith.constant 0 : i32
    return %c0_i32, %c0_i32_0 : i32, i32
  }
  func.func @transform_2(%arg0: i32) -> (i32, i32) {
    %c0_i32 = arith.constant 0 : i32
    %c0_i32_0 = arith.constant 0 : i32
    %c0_i32_1 = arith.constant 0 : i32
    return %c0_i32, %c0_i32_0 : i32, i32
  }
  func.func @transform_3(%arg0: i32) -> (i32, i32) {
    %c0_i32 = arith.constant 0 : i32
    %c0_i32_0 = arith.constant 0 : i32
    return %arg0, %c0_i32 : i32, i32
  }
}

</mosaic_0001>

<llo_original>
// kernel: tpu_custom_call.1
$region0: #{tpu_custom_call.1}
  #allocation0 [shape = 'u32[]', space=smem, size = 0x4, offset = 0x4, fixed_abs, tag = 'smem constant byte address 0x4 - core index']
  #allocation1 [shape = 'u32[144,128]{1,0:T(1,128)}', space=vmem, size = 0x12000, scoped, tag = 'internal scratch']
  %s0 = inlined_call_operand.hbm [shape: bf16[16,128], index: 0, kind: input, shape index: {}]
  %s1 = inlined_call_operand.hbm [shape: bf16[128,128], index: 1, kind: input, shape index: {}]
  %s2 = inlined_call_operand.vmem [shape: f32[1,128], index: 2, kind: input, shape index: {}]
  %s3 = inlined_call_operand.hbm [shape: f32[16,128], index: 3, kind: output, shape index: {}]
  %s4 = sld [smem:[#allocation0]]
  $region30: #{tpu_custom_call.1} parent=0
    _
  %s6 = ssub.s32 1, %s4
  %s7 = scalar_select 0, %s6, %s4
  $region1: #{tpu_custom_call.1} parent=0
    #allocation2 [shape = 'u8[4096]{0}', space=vmem, size = 0x1000, scoped, tag = 'input window, operand 0, single buffered']
    #allocation3 [shape = 's32[1]{0}', space=sflag, size = 0x4, scoped, tag = 'scoped memory for tpu_custom_call.1']
    #allocation4 [shape = 's32[1]{0}', space=sflag, size = 0x4, scoped, tag = 'scoped memory for tpu_custom_call.1']
    #allocation5 [shape = 'u8[32768]{0}', space=vmem, size = 0x8000, scoped, tag = 'input window, operand 1, single buffered']
    #allocation6 [shape = 's32[1]{0}', space=sflag, size = 0x4, scoped, tag = 'scoped memory for tpu_custom_call.1']
    #allocation7 [shape = 'u8[8192]{0}', space=vmem, size = 0x2000, scoped, tag = 'output window, operand 0, single buffered']
    %8 = vsyncpa [#allocation3], 0
    %9 = vsyncpa [#allocation6], 0
    %10 = vsyncpa [#allocation4], 0
    // Predicated region
    $region2: #{tpu_custom_call.1} parent=1 // pred_check
      _
    $region3: #{tpu_custom_call.1} parent=1 // pred_check_branch
      %12 = sbr.rel (0) target = $region5
    $region4: #{tpu_custom_call.1} parent=1 // pred_region
      %s14 = ssub.s32 128, 128
      %15 = vsyncadd [#allocation3], %s14
      %s16 = sshll.u32 [#allocation2], 4
      %s17 = int_to_ptr.vmem [resolvable:$true] %s16
      %22 = dma.hbm_to_vmem [thread:$0]  %s0, 128, %s17, [#allocation3], 64, 64, 4
    $region5: #{tpu_custom_call.1} parent=1 // pred_fallthru
      _
    // Predicated region
    $region6: #{tpu_custom_call.1} parent=1 // pred_check
      _
    $region7: #{tpu_custom_call.1} parent=1 // pred_check_branch
      %24 = sbr.rel (0) target = $region9
    $region8: #{tpu_custom_call.1} parent=1 // pred_region
      %s26 = ssub.s32 1024, 1024
      %27 = vsyncadd [#allocation6], %s26
      %s28 = sshll.u32 [#allocation5], 4
      %s29 = int_to_ptr.vmem [resolvable:$true] %s28
      %34 = dma.hbm_to_vmem [thread:$0]  %s1, 1024, %s29, [#allocation6], 64, 64, 4
    $region9: #{tpu_custom_call.1} parent=1 // pred_fallthru
      _
    // Predicated region
    $region10: #{tpu_custom_call.1} parent=1 // pred_check
      _
    $region11: #{tpu_custom_call.1} parent=1 // pred_check_branch
      %36 = sbr.rel (0) target = $region13
    $region12: #{tpu_custom_call.1} parent=1 // pred_region
      _
    $region13: #{tpu_custom_call.1} parent=1 // pred_fallthru
      _
    // Predicated region
    $region14: #{tpu_custom_call.1} parent=1 // pred_check
      _
    $region15: #{tpu_custom_call.1} parent=1 // pred_check_branch
      %38 = sbr.rel (0) target = $region17
    $region16: #{tpu_custom_call.1} parent=1 // pred_region
      %39 = dma.done [#allocation3], 128
    $region17: #{tpu_custom_call.1} parent=1 // pred_fallthru
      _
    // Predicated region
    $region18: #{tpu_custom_call.1} parent=1 // pred_check
      _
    $region19: #{tpu_custom_call.1} parent=1 // pred_check_branch
      %41 = sbr.rel (0) target = $region21
    $region20: #{tpu_custom_call.1} parent=1 // pred_region
      %42 = dma.done [#allocation6], 1024
    $region21: #{tpu_custom_call.1} parent=1 // pred_fallthru
      _
    %v44 = vld [vmem:[#allocation2] sm:$0xf]
    %v45 = vld [vmem:[#allocation2 + $0x4] sm:$0xf]
    %v46 = vld [vmem:[#allocation5] sm:$0xf]
    %v47 = vld [vmem:[#allocation5 + $0x4] sm:$0xf]
    %v48 = vld [vmem:[#allocation5 + $0x8] sm:$0xf]
    %v49 = vld [vmem:[#allocation5 + $0xc] sm:$0xf]
    %v50 = vld [vmem:[#allocation5 + $0x10] sm:$0xf]
    %v51 = vld [vmem:[#allocation5 + $0x14] sm:$0xf]
    %v52 = vld [vmem:[#allocation5 + $0x18] sm:$0xf]
    %v53 = vld [vmem:[#allocation5 + $0x1c] sm:$0xf]
    %v54 = vld [vmem:[#allocation5 + $0x20] sm:$0xf]
    %v55 = vld [vmem:[#allocation5 + $0x24] sm:$0xf]
    %v56 = vld [vmem:[#allocation5 + $0x28] sm:$0xf]
    %v57 = vld [vmem:[#allocation5 + $0x2c] sm:$0xf]
    %v58 = vld [vmem:[#allocation5 + $0x30] sm:$0xf]
    %v59 = vld [vmem:[#allocation5 + $0x34] sm:$0xf]
    %v60 = vld [vmem:[#allocation5 + $0x38] sm:$0xf]
    %v61 = vld [vmem:[#allocation5 + $0x3c] sm:$0xf]
    %v62 = vld [vmem:[%s2] sm:$0x1]
    %v64 = vlaneseq
    %v65 = vshrl.u32 %v64, 7
    %v66 = vsub.s32 0, %v65
    %v67 = vrot.slane %v62, %v66
    %v71 = vunpack.c.l.b16 %v44
    %v72 = vunpack.c.l.b16 %v45
    %v73 = vpack.c.b16 %v72, %v71
    %v91 = vunpack.c.l.b16 %v46
    %v92 = vunpack.c.l.b16 %v47
    %v93 = vunpack.c.l.b16 %v48
    %v94 = vunpack.c.l.b16 %v49
    %v95 = vunpack.c.l.b16 %v50
    %v96 = vunpack.c.l.b16 %v51
    %v97 = vunpack.c.l.b16 %v52
    %v98 = vunpack.c.l.b16 %v53
    %v99 = vunpack.c.l.b16 %v54
    %v100 = vunpack.c.l.b16 %v55
    %v101 = vunpack.c.l.b16 %v56
    %v102 = vunpack.c.l.b16 %v57
    %v103 = vunpack.c.l.b16 %v58
    %v104 = vunpack.c.l.b16 %v59
    %v105 = vunpack.c.l.b16 %v60
    %v106 = vunpack.c.l.b16 %v61
    %v107 = vpack.c.b16 %v92, %v91
    %v108 = vpack.c.b16 %v94, %v93
    %v109 = vpack.c.b16 %v96, %v95
    %v110 = vpack.c.b16 %v98, %v97
    %v111 = vpack.c.b16 %v100, %v99
    %v112 = vpack.c.b16 %v102, %v101
    %v113 = vpack.c.b16 %v104, %v103
    %v114 = vpack.c.b16 %v106, %v105
    %123 = vmatprep.subr.bf16.mxu0 0
    %124 = vmatpush1.bf16.msra.mxu0 %v107
    %125 = vmatprep.subr.bf16.mxu0 0
    %126 = vmatpush1.bf16.msra.mxu0 %v108
    %127 = vmatprep.subr.bf16.mxu0 0
    %128 = vmatpush1.bf16.msra.mxu0 %v109
    %129 = vmatprep.subr.bf16.mxu0 0
    %130 = vmatpush1.bf16.msra.mxu0 %v110
    %131 = vmatprep.subr.bf16.mxu0 0
    %132 = vmatpush1.bf16.msra.mxu0 %v111
    %133 = vmatprep.subr.bf16.mxu0 0
    %134 = vmatpush1.bf16.msra.mxu0 %v112
    %135 = vmatprep.subr.bf16.mxu0 0
    %136 = vmatpush1.bf16.msra.mxu0 %v113
    %137 = vmatprep.subr.bf16.mxu0 0
    %138 = vmatpush1.bf16.msra.mxu0 %v114
    %139 = vmatprep.subr.bf16.mxu0 0
    %140 = vmatpush1.bf16.msra.mxu0 0
    %141 = vmatprep.subr.bf16.mxu0 0
    %142 = vmatpush1.bf16.msra.mxu0 0
    %143 = vmatprep.subr.bf16.mxu0 0
    %144 = vmatpush1.bf16.msra.mxu0 0
    %145 = vmatprep.subr.bf16.mxu0 0
    %146 = vmatpush1.bf16.msra.mxu0 0
    %147 = vmatprep.subr.bf16.mxu0 0
    %148 = vmatpush1.bf16.msra.mxu0 0
    %149 = vmatprep.subr.bf16.mxu0 0
    %150 = vmatpush1.bf16.msra.mxu0 0
    %151 = vmatprep.subr.bf16.mxu0 0
    %152 = vmatpush1.bf16.msra.mxu0 0
    %153 = vmatprep.subr.bf16.mxu0 0
    %154 = vmatpush1.bf16.msra.mxu0 0
    %155 = vmatprep.mubr.bf16.mxu0 0
    %156 = vmatmul.mubr.bf16.gmra.mrb[0].mxu0 %v73
    %v157 = vpop.f32.mrb[0].mxu0
    %v158 = vadd.f32 %v67, %v157
    %v159 = vpop.f32.mrb[0].mxu0
    %v160 = vpop.f32.mrb[0].mxu0
    %v161 = vadd.f32 %v67, %v160
    %v162 = vpop.f32.mrb[0].mxu0
    %163 = vdwg.mxu0
    %164 = vst [vmem:[#allocation7] sm:$0xff] %v158
    %165 = vst [vmem:[#allocation7 + $0x8] sm:$0xff] %v161
    // Predicated region
    $region22: #{tpu_custom_call.1} parent=1 // pred_check
      _
    $region23: #{tpu_custom_call.1} parent=1 // pred_check_branch
      %167 = sbr.rel (0) target = $region25
    $region24: #{tpu_custom_call.1} parent=1 // pred_region
      %s169 = ssub.s32 256, 256
      %170 = vsyncadd [#allocation4], %s169
      %s171 = sshll.u32 [#allocation7], 4
      %s172 = int_to_ptr.vmem [resolvable:$true] %s171
      %177 = dma.vmem_to_hbm [thread:$0]  %s172, 256, %s3, [#allocation4], 128, 128, 8
    $region25: #{tpu_custom_call.1} parent=1 // pred_fallthru
      _
    // Predicated region
    $region26: #{tpu_custom_call.1} parent=1 // pred_check
      _
    $region27: #{tpu_custom_call.1} parent=1 // pred_check_branch
      %179 = sbr.rel (0) target = $region29
    $region28: #{tpu_custom_call.1} parent=1 // pred_region
      %180 = dma.done [#allocation4], 256
    $region29: #{tpu_custom_call.1} parent=1 // pred_fallthru
      _
    %181 = vsyncpa [#allocation3], 1
    %182 = vsyncpa [#allocation6], 1
    %183 = vsyncpa [#allocation4], 1

</llo_original>
